<compile_context>
chip_gen: v6e
topology: v6e:2x2x1
jax: 0.10.0
libtpu: 0.0.40
codegen_flags: <defaults>
</compile_context>

<pallas_src>
import math

import jax
import jax.numpy as jnp
from jax.experimental import pallas as pl
from jax.experimental.pallas import tpu as pltpu


def _round_up(x: int, m: int) -> int:
    return (x + m - 1) // m * m


def _vmem_capacity_bytes() -> int:
    """Generation-aware VMEM capacity (falls back to the smallest, v7x)."""
    try:
        cap = getattr(pltpu.get_tpu_info(), "vmem_capacity_bytes", None)
        if cap:
            return int(cap)
    except Exception:
        pass
    return 64 << 20


def _inner_product_decoder_kernel(zi_ref, zt_ref, out_ref):
    # zi_ref : (tm, D)     pipelined row block of z.
    # zt_ref : (D, C_pad)  resident z^T (constant index_map -> fetched once).
    # out_ref: (tm, C_pad) full-row output slab.
    s = jnp.dot(zi_ref[...], zt_ref[...], preferred_element_type=jnp.float32)
    # sigmoid(x) == 0.5 * (1 + tanh(x / 2)): single EUP op per element.
    out_ref[...] = (0.5 * (1.0 + jnp.tanh(0.5 * s))).astype(out_ref.dtype)


def inner_product_decoder(z, *, tm=None, out_dtype=None,
                          dropout=0.0, training=False):
    """adj = sigmoid(z @ z.T).

    Dropout is identity in eval mode (training=False), matching the PyTorch
    module's forward.  `out_dtype=jnp.bfloat16` is the fast path (halves the
    N^2 HBM writeback) but changes output precision vs. the PyTorch module,
    so f32 (z.dtype) remains the default.
    """
    if training and dropout > 0.0:
        # TODO(synk): training-mode dropout mask via pltpu.prng_random_bits.
        raise NotImplementedError("training-mode dropout not implemented")

    N, D = z.shape
    in_dtype = jnp.dtype(z.dtype)
    out_dtype = jnp.dtype(out_dtype) if out_dtype is not None else in_dtype
    in_bytes = in_dtype.itemsize
    out_bytes = out_dtype.itemsize

    # ---- tiling: full-row output tiles, independent row/col padding ----
    c_pad = _round_up(N, 128)                       # lane-dense column extent
    vmem_budget = int(_vmem_capacity_bytes() * 0.75)  # ~25% headroom for Mosaic

    if tm is None:
        # Resident z^T is double-buffered by the default pipeline (its second
        # buffer is tiny: D*C_pad*itemsize); account for it in the budget.
        fixed = 2 * D * c_pad * in_bytes
        per_row = 2 * D * in_bytes + 2 * c_pad * out_bytes
        tm_vmem = max((vmem_budget - fixed) // per_row, 8)
        tm_target = max((8 << 20) // (c_pad * out_bytes), 8)  # ~8 MiB tiles
        tm = int(min(tm_vmem, tm_target))
    tm = max(8, (int(tm) // 8) * 8)                 # sublane-aligned
    tm = min(tm, _round_up(N, 8))
    if N > 8:
        # Keep >= 2 row blocks so v7x's two TensorCores both get work.
        tm = min(tm, _round_up((N + 1) // 2, 8))
    r_pad = _round_up(N, tm)

    z_rows = z if r_pad == N else jnp.pad(z, ((0, r_pad - N), (0, 0)))
    z_cols = z if c_pad == N else jnp.pad(z, ((0, c_pad - N), (0, 0)))
    zt = z_cols.T                                   # one-time wrapper transpose

    grid = (r_pad // tm,)

    adj_pad = pl.pallas_call(
        _inner_product_decoder_kernel,
        out_shape=jax.ShapeDtypeStruct((r_pad, c_pad), out_dtype),
        grid_spec=pltpu.PrefetchScalarGridSpec(
            num_scalar_prefetch=0,
            grid=grid,
            in_specs=[
                # Pipelined row block of z.
                pl.BlockSpec((tm, D), lambda i: (i, 0)),
                # Full z^T resident in VMEM (constant index -> fetched once).
                pl.BlockSpec((D, c_pad), lambda i: (0, 0)),
            ],
            out_specs=pl.BlockSpec((tm, c_pad), lambda i: (i, 0)),
        ),
        compiler_params=pltpu.CompilerParams(
            dimension_semantics=("parallel",),
            vmem_limit_bytes=vmem_budget,
        ),
    )(z_rows, zt)

    if (r_pad, c_pad) != (N, N):
        adj_pad = adj_pad[:N, :N]
    return adj_pad


if __name__ == "__main__":
    key = jax.random.PRNGKey(0)

    # Small latent embedding: 256 nodes, 32-d latent.
    N, D = 256, 32
    z = jax.random.normal(key, (N, D), dtype=jnp.float32)
    adj = jax.block_until_ready(inner_product_decoder(z))
    ref = jax.nn.sigmoid(
        jnp.dot(z, z.T, precision=jax.lax.Precision.HIGHEST))
    assert adj.shape == (N, N)
    assert jnp.allclose(adj, ref, atol=2e-5, rtol=1e-5)

    # Non-multiple N exercises the independent row/column padding path.
    N2 = 200
    z2 = jax.random.normal(jax.random.PRNGKey(0), (N2, D), dtype=jnp.float32)
    adj2 = jax.block_until_ready(inner_product_decoder(z2))
    ref2 = jax.nn.sigmoid(
        jnp.dot(z2, z2.T, precision=jax.lax.Precision.HIGHEST))
    assert adj2.shape == (N2, N2)
    assert jnp.allclose(adj2, ref2, atol=2e-5, rtol=1e-5)

    # Opt-in bf16 writeback fast path (looser tolerance, halves HBM traffic).
    adj_bf16 = jax.block_until_ready(
        inner_product_decoder(z, out_dtype=jnp.bfloat16))
    assert adj_bf16.dtype == jnp.bfloat16
    assert jnp.allclose(adj_bf16.astype(jnp.float32), ref, atol=5e-3, rtol=5e-3)

    print("KERNEL_OK")
</pallas_src>

<mosaic_0001>
module attributes {stable_mosaic.version = 11 : i64} {
  func.func @_inner_product_decoder_kernel(%arg0: i32, %arg1: memref<128x32xf32, #tpu.memory_space<vmem>>, %arg2: memref<32x256xf32, #tpu.memory_space<vmem>>, %arg3: memref<128x256xf32, #tpu.memory_space<vmem>>) attributes {dimension_semantics = [#tpu.dimension_semantics<parallel>], iteration_bounds = array<i64: 2>, scalar_prefetch = 0 : i64, scratch_operands = 0 : i64, tpu.core_type = #tpu.core_type<tc>, window_params = [{transform_indices = @transform_0, window_bounds = array<i64: 128, 32>}, {pipeline_mode = #tpu.pipeline_mode<synchronous>, transform_indices = @transform_1, window_bounds = array<i64: 32, 256>}, {transform_indices = @transform_2, window_bounds = array<i64: 128, 256>}]} {
    %c0 = arith.constant 0 : index
    %c0_0 = arith.constant 0 : index
    %0 = vector.load %arg1[%c0, %c0_0] : memref<128x32xf32, #tpu.memory_space<vmem>>, vector<128x32xf32>
    %c0_1 = arith.constant 0 : index
    %c0_2 = arith.constant 0 : index
    %1 = vector.load %arg2[%c0_1, %c0_2] : memref<32x256xf32, #tpu.memory_space<vmem>>, vector<32x256xf32>
    %cst = arith.constant dense<0.000000e+00> : vector<128x256xf32>
    %2 = tpu.matmul %0, %1, %cst {dimension_numbers = #tpu.dot_dimension_numbers<[1], [0], [0], [1], [0, 0, 1, 1], [], []>} : vector<128x32xf32>, vector<32x256xf32>, vector<128x256xf32> -> vector<128x256xf32>
    %cst_3 = arith.constant 5.000000e-01 : f32
    %3 = vector.broadcast %cst_3 : f32 to vector<128x256xf32>
    %4 = arith.mulf %3, %2 : vector<128x256xf32>
    %5 = math.tanh %4 : vector<128x256xf32>
    %cst_4 = arith.constant 1.000000e+00 : f32
    %6 = vector.broadcast %cst_4 : f32 to vector<128x256xf32>
    %7 = arith.addf %6, %5 : vector<128x256xf32>
    %cst_5 = arith.constant 5.000000e-01 : f32
    %8 = vector.broadcast %cst_5 : f32 to vector<128x256xf32>
    %9 = arith.mulf %8, %7 : vector<128x256xf32>
    %c0_6 = arith.constant 0 : index
    %c0_7 = arith.constant 0 : index
    %10 = vector.load %arg3[%c0_6, %c0_7] : memref<128x256xf32, #tpu.memory_space<vmem>>, vector<128x256xf32>
    tpu.vector_store %arg3[%c0_6, %c0_7], %9 {strides = array<i32>} : memref<128x256xf32, #tpu.memory_space<vmem>>, vector<128x256xf32>,
    return
  }
  func.func @transform_0(%arg0: i32) -> (i32, i32) {
    %c0_i32 = arith.constant 0 : i32
    %c0_i32_0 = arith.constant 0 : i32
    return %arg0, %c0_i32 : i32, i32
  }
  func.func @transform_1(%arg0: i32) -> (i32, i32) {
    %c0_i32 = arith.constant 0 : i32
    %c0_i32_0 = arith.constant 0 : i32
    %c0_i32_1 = arith.constant 0 : i32
    return %c0_i32, %c0_i32_0 : i32, i32
  }
  func.func @transform_2(%arg0: i32) -> (i32, i32) {
    %c0_i32 = arith.constant 0 : i32
    %c0_i32_0 = arith.constant 0 : i32
    return %arg0, %c0_i32 : i32, i32
  }
}

</mosaic_0001>

<llo_original>
// kernel: tpu_custom_call.1
$region0: #{tpu_custom_call.1}
  #allocation0 [shape = 'u32[]', space=smem, size = 0x4, offset = 0x4, fixed_abs, tag = 'smem constant byte address 0x4 - core index']
  #allocation1 [shape = 'u32[144,128]{1,0:T(1,128)}', space=vmem, size = 0x12000, scoped, tag = 'internal scratch']
  %s0 = inlined_call_operand.vmem [shape: f32[256,32], index: 0, kind: input, shape index: {}]
  %s1 = inlined_call_operand.vmem [shape: f32[32,256], index: 1, kind: input, shape index: {}]
  %s2 = inlined_call_operand.hbm [shape: f32[256,256], index: 2, kind: output, shape index: {}]
  %s3 = sld [smem:[#allocation0]]
  $region41: #{tpu_custom_call.1} parent=0
    _
  %s5 = ssub.s32 1, %s3
  %s6 = scalar_select 0, %s5, %s3
  $region1: #{tpu_custom_call.1} parent=0
    #allocation2 [shape = 'u8[262144]{0}', space=vmem, size = 0x40000, scoped, tag = 'output window, operand 0']
    #allocation3 [shape = 's32[2]{0}', space=sflag, size = 0x8, scoped, tag = 'scoped memory for tpu_custom_call.1']
    %7 = vsyncpa [#allocation3], 0
    %s8 = scalar_lea.sflag [#allocation3], 1
    %9 = vsyncpa %s8, 0
    loop: start=0, step=1, limit=4
    $region2: #{tpu_custom_call.1} parent=1 // loop_pre_header
      _
    $region3: #{tpu_custom_call.1} parent=1 // loop_header
      %s11 = sphi 0, %s15
      %p12 = scmp.ge.s32.totalorder %s11, 4
      %s21 = sphi 0, %s23
      %s24 = sphi 0, %s21
      %s25 = sphi 0, %s24
      %s41 = sphi 0, %s25
      %s45 = sphi 0, %s45
      %s47 = sphi 0, %s45
      %s48 = sphi 0, %s47
      %s62 = sphi 0, %s48
      %s68 = sphi 0, %s70
      %s71 = sphi 0, %s68
      %s72 = sphi 0, %s71
      %s88 = sphi 0, %s72
    $region4: #{tpu_custom_call.1} parent=1 // loop_header_branch
      %14 = sbr.rel (%p12) target = $region8
    $region5: #{tpu_custom_call.1} parent=1 // loop_body
      %s16 = ssub.s32 %s11, 1
      %s17 = ssub.s32 %s11, 2
      %s18 = sadd.s32 %s11, 1
      %s19 = ssub.s32 %s11, %s18
      %p20 = scmp.eq.s32.totalorder %s19, 0
      %s22 = sadd.s32 %s21, 1
      %s23 = scalar_select %p20, %s21, %s22
      %p26 = pneg %p20
      %p27 = scmp.eq.s32.totalorder %s11, 1
      %p28 = por %p26, %p27
      %p29 = scmp.ne.s32.totalorder %s21, %s24
      %p30 = scmp.eq.s32.totalorder %s11, 0
      %p31 = por %p29, %p30
      %p32 = scmp.ne.s32.totalorder %s21, %s24
      %p33 = scmp.eq.s32.totalorder %s16, 1
      %p34 = por %p32, %p33
      %p35 = scmp.ne.s32.totalorder %s24, %s25
      %p36 = scmp.eq.s32.totalorder %s16, 0
      %p37 = por %p35, %p36
      %p38 = scmp.ne.s32.totalorder %s24, %s25
      %p39 = scmp.eq.s32.totalorder %s17, 1
      %p40 = por %p38, %p39
      %p42 = scmp.ne.s32.totalorder %s25, %s41
      %p43 = scmp.eq.s32.totalorder %s17, 0
      %p44 = por %p42, %p43
      %s46 = sadd.s32 %s45, 1
      %p49 = scmp.eq.s32.totalorder %s11, 1
      %p50 = scmp.ne.s32.totalorder %s45, %s47
      %p51 = scmp.eq.s32.totalorder %s11, 0
      %p52 = por %p50, %p51
      %p53 = scmp.ne.s32.totalorder %s45, %s47
      %p54 = scmp.eq.s32.totalorder %s16, 1
      %p55 = por %p53, %p54
      %p56 = scmp.ne.s32.totalorder %s47, %s48
      %p57 = scmp.eq.s32.totalorder %s16, 0
      %p58 = por %p56, %p57
      %p59 = scmp.ne.s32.totalorder %s47, %s48
      %p60 = scmp.eq.s32.totalorder %s17, 1
      %p61 = por %p59, %p60
      %p63 = scmp.ne.s32.totalorder %s48, %s62
      %p64 = scmp.eq.s32.totalorder %s17, 0
      %p65 = por %p63, %p64
      %s66 = ssub.s32 %s11, %s18
      %p67 = scmp.eq.s32.totalorder %s66, 0
      %s69 = sadd.s32 %s68, 1
      %s70 = scalar_select %p67, %s68, %s69
      %p73 = pneg %p67
      %p74 = scmp.eq.s32.totalorder %s11, 1
      %p75 = por %p73, %p74
      %p76 = scmp.ne.s32.totalorder %s68, %s71
      %p77 = scmp.eq.s32.totalorder %s11, 0
      %p78 = por %p76, %p77
      %p79 = scmp.ne.s32.totalorder %s68, %s71
      %p80 = scmp.eq.s32.totalorder %s16, 1
      %p81 = por %p79, %p80
      %p82 = scmp.ne.s32.totalorder %s71, %s72
      %p83 = scmp.eq.s32.totalorder %s16, 0
      %p84 = por %p82, %p83
      %p85 = scmp.ne.s32.totalorder %s71, %s72
      %p86 = scmp.eq.s32.totalorder %s17, 1
      %p87 = por %p85, %p86
      %p89 = scmp.ne.s32.totalorder %s72, %s88
      %p90 = scmp.eq.s32.totalorder %s17, 0
      %p91 = por %p89, %p90
      %p92 = scmp.le.s32.totalorder 1, %s11
      %p93 = scmp.lt.s32.totalorder %s11, 3
      %p94 = pnand %p92, %p93
      %p95 = pneg %p94
      // Predicated region
      $region9: #{tpu_custom_call.1} parent=5 // pred_check
        _
      $region10: #{tpu_custom_call.1} parent=5 // pred_check_branch
        %97 = sbr.rel (%p94) target = $region12
      $region11: #{tpu_custom_call.1} parent=5 // pred_region
        %s98 = ssub.s32 %s11, 1
        // Predicated region
        $region13: #{tpu_custom_call.1} parent=11 // pred_check
          %p99 = pneg %p58
        $region14: #{tpu_custom_call.1} parent=11 // pred_check_branch
          %101 = sbr.rel (%p99) target = $region16
        $region15: #{tpu_custom_call.1} parent=11 // pred_region
          _
        $region16: #{tpu_custom_call.1} parent=11 // pred_fallthru
          _
      $region12: #{tpu_custom_call.1} parent=5 // pred_fallthru
        _
      %p102 = scmp.lt.s32.totalorder %s11, 2
      // Predicated region
      $region17: #{tpu_custom_call.1} parent=5 // pred_check
        %p103 = pneg %p102
      $region18: #{tpu_custom_call.1} parent=5 // pred_check_branch
        %105 = sbr.rel (%p103) target = $region20
      $region19: #{tpu_custom_call.1} parent=5 // pred_region
        // Predicated region
        $region21: #{tpu_custom_call.1} parent=19 // pred_check
          %p106 = pneg %p31
        $region22: #{tpu_custom_call.1} parent=19 // pred_check_branch
          %108 = sbr.rel (%p106) target = $region24
        $region23: #{tpu_custom_call.1} parent=19 // pred_region
          %s109 = smul.u32 16, %s11
          %p110 = scmp.lt.s32.totalorder %s109, 31
          %s111 = scalar_select %p110, %s109, 31
          %s112 = smul.addr %s111, 8
          %s113 = scalar_lea.vmem %s0, %s112
          %s114 = smul.u32 16, %s11
        $region24: #{tpu_custom_call.1} parent=19 // pred_fallthru
          _
      $region20: #{tpu_custom_call.1} parent=5 // pred_fallthru
        _
      %p115 = scmp.le.s32.totalorder 1, %s11
      %p116 = scmp.lt.s32.totalorder %s11, 3
      %p117 = pnand %p115, %p116
      %p118 = pneg %p117
      // Predicated region
      $region25: #{tpu_custom_call.1} parent=5 // pred_check
        _
      $region26: #{tpu_custom_call.1} parent=5 // pred_check_branch
        %120 = sbr.rel (%p117) target = $region28
      $region27: #{tpu_custom_call.1} parent=5 // pred_region
        %s121 = ssub.s32 %s11, 1
        %s122 = smul.u32 16, %s16
        %p123 = scmp.lt.s32.totalorder %s122, 31
        %s124 = scalar_select %p123, %s122, 31
        %s125 = smul.addr %s124, 8
        %s126 = scalar_lea.vmem %s0, %s125
        %p127 = pneg %p37
        %p128 = pneg %p34
        %p129 = pneg %p58
        %p130 = pneg %p55
        %p131 = pneg %p84
        %p132 = pneg %p81
        %s133 = sand.u32 %s71, 1
        %s134 = scalar_lea.sflag [#allocation3], %s133
        %s135 = sand.u32 %s71, 1
        %s136 = smul.addr %s135, 256
        %s137 = scalar_lea.vmem [#allocation2], %s136
        %s138 = smul.u32 16, %s16
        %p139 = scmp.lt.s32.totalorder %s138, 31
        %s140 = scalar_select %p139, %s138, 31
        %s141 = smul.addr %s140, 8
        %s142 = scalar_lea.vmem %s0, %s141
        %s143 = smul.u32 16, %s16
        %s144 = smul.u32 16, %s16
        %v145 = vld [vmem:[%s142] sm:$0xff]
        %v146 = vld [vmem:[%s142 + $0x8] sm:$0xff]
        %v147 = vld [vmem:[%s142 + $0x10] sm:$0xff]
        %v148 = vld [vmem:[%s142 + $0x18] sm:$0xff]
        %v149 = vld [vmem:[%s142 + $0x20] sm:$0xff]
        %v150 = vld [vmem:[%s142 + $0x28] sm:$0xff]
        %v151 = vld [vmem:[%s142 + $0x30] sm:$0xff]
        %v152 = vld [vmem:[%s142 + $0x38] sm:$0xff]
        %v153 = vld [vmem:[%s142 + $0x40] sm:$0xff]
        %v154 = vld [vmem:[%s142 + $0x48] sm:$0xff]
        %v155 = vld [vmem:[%s142 + $0x50] sm:$0xff]
        %v156 = vld [vmem:[%s142 + $0x58] sm:$0xff]
        %v157 = vld [vmem:[%s142 + $0x60] sm:$0xff]
        %v158 = vld [vmem:[%s142 + $0x68] sm:$0xff]
        %v159 = vld [vmem:[%s142 + $0x70] sm:$0xff]
        %v160 = vld [vmem:[%s142 + $0x78] sm:$0xff]
        %v161 = vld [vmem:[%s1] sm:$0xff]
        %v162 = vld [vmem:[%s1 + $0x8] sm:$0xff]
        %v163 = vld [vmem:[%s1 + $0x10] sm:$0xff]
        %v164 = vld [vmem:[%s1 + $0x18] sm:$0xff]
        %v165 = vld [vmem:[%s1 + $0x20] sm:$0xff]
        %v166 = vld [vmem:[%s1 + $0x28] sm:$0xff]
        %v167 = vld [vmem:[%s1 + $0x30] sm:$0xff]
        %v168 = vld [vmem:[%s1 + $0x38] sm:$0xff]
        %vm169 = vcmask 261120
        %v171 = vsel %vm169, %v145, 0
        %v174 = vsel %vm169, %v146, 0
        %v177 = vsel %vm169, %v147, 0
        %v180 = vsel %vm169, %v148, 0
        %v183 = vsel %vm169, %v149, 0
        %v186 = vsel %vm169, %v150, 0
        %v189 = vsel %vm169, %v151, 0
        %v192 = vsel %vm169, %v152, 0
        %v195 = vsel %vm169, %v153, 0
        %v198 = vsel %vm169, %v154, 0
        %v201 = vsel %vm169, %v155, 0
        %v204 = vsel %vm169, %v156, 0
        %v207 = vsel %vm169, %v157, 0
        %v210 = vsel %vm169, %v158, 0
        %v213 = vsel %vm169, %v159, 0
        %v216 = vsel %vm169, %v160, 0
        %218 = vmatprep.subr.mxu0 0.0
        %219 = vmatpush1.msra.mxu0 0.0
        %220 = vmatprep.subr.mxu0 0.0
        %221 = vmatpush1.msra.mxu0 0.0
        %222 = vmatprep.subr.mxu0 0.0
        %223 = vmatpush1.msra.mxu0 0.0
        %224 = vmatprep.subr.mxu0 0.0
        %225 = vmatpush1.msra.mxu0 0.0
        %226 = vmatprep.subr.mxu0 0.0
        %227 = vmatpush1.msra.mxu0 0.0
        %228 = vmatprep.subr.mxu0 0.0
        %229 = vmatpush1.msra.mxu0 0.0
        %230 = vmatprep.subr.mxu0 0.0
        %231 = vmatpush1.msra.mxu0 0.0
        %232 = vmatprep.subr.mxu0 0.0
        %233 = vmatpush1.msra.mxu0 0.0
        %234 = vmatprep.subr.mxu0 0.0
        %235 = vmatpush1.msra.mxu0 0.0
        %236 = vmatprep.subr.mxu0 0.0
        %237 = vmatpush1.msra.mxu0 0.0
        %238 = vmatprep.subr.mxu0 0.0
        %239 = vmatpush1.msra.mxu0 0.0
        %240 = vmatprep.subr.mxu0 0.0
        %241 = vmatpush1.msra.mxu0 0.0
        %242 = vmatprep.subr.mxu0 %v168
        %243 = vmatpush1.msra.mxu0 %v167
        %244 = vmatprep.subr.mxu0 %v166
        %245 = vmatpush1.msra.mxu0 %v165
        %246 = vmatprep.subr.mxu0 %v164
        %247 = vmatpush1.msra.mxu0 %v163
        %248 = vmatprep.subr.mxu0 %v162
        %249 = vmatpush1.msra.mxu0 %v161
        %250 = vmatprep.subr.mxu0 0.0
        %251 = vmatpush2.msra.mxu0 0.0
        %252 = vmatprep.subr.mxu0 0.0
        %253 = vmatpush2.msra.mxu0 0.0
        %254 = vmatprep.subr.mxu0 0.0
        %255 = vmatpush2.msra.mxu0 0.0
        %256 = vmatprep.subr.mxu0 0.0
        %257 = vmatpush2.msra.mxu0 0.0
        %258 = vmatprep.subr.mxu0 0.0
        %259 = vmatpush2.msra.mxu0 0.0
        %260 = vmatprep.subr.mxu0 0.0
        %261 = vmatpush2.msra.mxu0 0.0
        %262 = vmatprep.subr.mxu0 0.0
        %263 = vmatpush2.msra.mxu0 0.0
        %264 = vmatprep.subr.mxu0 0.0
        %265 = vmatpush2.msra.mxu0 0.0
        %266 = vmatprep.subr.mxu0 0.0
        %267 = vmatpush2.msra.mxu0 0.0
        %268 = vmatprep.subr.mxu0 0.0
        %269 = vmatpush2.msra.mxu0 0.0
        %270 = vmatprep.subr.mxu0 0.0
        %271 = vmatpush2.msra.mxu0 0.0
        %272 = vmatprep.subr.mxu0 0.0
        %273 = vmatpush2.msra.mxu0 0.0
        %274 = vmatprep.subr.mxu0 0.0
        %275 = vmatpush2.msra.mxu0 0.0
        %276 = vmatprep.subr.mxu0 0.0
        %277 = vmatpush2.msra.mxu0 0.0
        %278 = vmatprep.subr.mxu0 0.0
        %279 = vmatpush2.msra.mxu0 0.0
        %280 = vmatprep.subr.mxu0 0.0
        %281 = vmatpush2.msra.mxu0 0.0
        %282 = vmatprep.mubr.f32.mxu0 0.0
        %283 = vmatmul.mubr.f32.gmra.mxu0 %v171
        %v284 = vpop.f32.mrf.mxu0
        %v285 = vadd.f32 0.0, %v284
        %v286 = vpop.f32.mrf.mxu0
        %v287 = vadd.f32 0.0, %v286
        %288 = vmatprep.mubr.f32.mxu0 0.0
        %289 = vmatmul.mubr.f32.gmra.mxu0 %v174
        %v290 = vpop.f32.mrf.mxu0
        %v291 = vadd.f32 0.0, %v290
        %v292 = vpop.f32.mrf.mxu0
        %v293 = vadd.f32 0.0, %v292
        %294 = vmatprep.mubr.f32.mxu0 0.0
        %295 = vmatmul.mubr.f32.gmra.mxu0 %v177
        %v296 = vpop.f32.mrf.mxu0
        %v297 = vadd.f32 0.0, %v296
        %v298 = vpop.f32.mrf.mxu0
        %v299 = vadd.f32 0.0, %v298
        %300 = vmatprep.mubr.f32.mxu0 0.0
        %301 = vmatmul.mubr.f32.gmra.mxu0 %v180
        %v302 = vpop.f32.mrf.mxu0
        %v303 = vadd.f32 0.0, %v302
        %v304 = vpop.f32.mrf.mxu0
        %v305 = vadd.f32 0.0, %v304
        %306 = vmatprep.mubr.f32.mxu0 0.0
        %307 = vmatmul.mubr.f32.gmra.mxu0 %v183
        %v308 = vpop.f32.mrf.mxu0
        %v309 = vadd.f32 0.0, %v308
        %v310 = vpop.f32.mrf.mxu0
        %v311 = vadd.f32 0.0, %v310
        %312 = vmatprep.mubr.f32.mxu0 0.0
        %313 = vmatmul.mubr.f32.gmra.mxu0 %v186
        %v314 = vpop.f32.mrf.mxu0
        %v315 = vadd.f32 0.0, %v314
        %v316 = vpop.f32.mrf.mxu0
        %v317 = vadd.f32 0.0, %v316
        %318 = vmatprep.mubr.f32.mxu0 0.0
        %319 = vmatmul.mubr.f32.gmra.mxu0 %v189
        %v320 = vpop.f32.mrf.mxu0
        %v321 = vadd.f32 0.0, %v320
        %v322 = vpop.f32.mrf.mxu0
        %v323 = vadd.f32 0.0, %v322
        %324 = vmatprep.mubr.f32.mxu0 0.0
        %325 = vmatmul.mubr.f32.gmra.mxu0 %v192
        %v326 = vpop.f32.mrf.mxu0
        %v327 = vadd.f32 0.0, %v326
        %v328 = vpop.f32.mrf.mxu0
        %v329 = vadd.f32 0.0, %v328
        %330 = vmatprep.mubr.f32.mxu0 0.0
        %331 = vmatmul.mubr.f32.gmra.mxu0 %v195
        %v332 = vpop.f32.mrf.mxu0
        %v333 = vadd.f32 0.0, %v332
        %v334 = vpop.f32.mrf.mxu0
        %v335 = vadd.f32 0.0, %v334
        %336 = vmatprep.mubr.f32.mxu0 0.0
        %337 = vmatmul.mubr.f32.gmra.mxu0 %v198
        %v338 = vpop.f32.mrf.mxu0
        %v339 = vadd.f32 0.0, %v338
        %v340 = vpop.f32.mrf.mxu0
        %v341 = vadd.f32 0.0, %v340
        %342 = vmatprep.mubr.f32.mxu0 0.0
        %343 = vmatmul.mubr.f32.gmra.mxu0 %v201
        %v344 = vpop.f32.mrf.mxu0
        %v345 = vadd.f32 0.0, %v344
        %v346 = vpop.f32.mrf.mxu0
        %v347 = vadd.f32 0.0, %v346
        %348 = vmatprep.mubr.f32.mxu0 0.0
        %349 = vmatmul.mubr.f32.gmra.mxu0 %v204
        %v350 = vpop.f32.mrf.mxu0
        %v351 = vadd.f32 0.0, %v350
        %v352 = vpop.f32.mrf.mxu0
        %v353 = vadd.f32 0.0, %v352
        %354 = vmatprep.mubr.f32.mxu0 0.0
        %355 = vmatmul.mubr.f32.gmra.mxu0 %v207
        %v356 = vpop.f32.mrf.mxu0
        %v357 = vadd.f32 0.0, %v356
        %v358 = vpop.f32.mrf.mxu0
        %v359 = vadd.f32 0.0, %v358
        %360 = vmatprep.mubr.f32.mxu0 0.0
        %361 = vmatmul.mubr.f32.gmra.mxu0 %v210
        %v362 = vpop.f32.mrf.mxu0
        %v363 = vadd.f32 0.0, %v362
        %v364 = vpop.f32.mrf.mxu0
        %v365 = vadd.f32 0.0, %v364
        %366 = vmatprep.mubr.f32.mxu0 0.0
        %367 = vmatmul.mubr.f32.gmra.mxu0 %v213
        %v368 = vpop.f32.mrf.mxu0
        %v369 = vadd.f32 0.0, %v368
        %v370 = vpop.f32.mrf.mxu0
        %v371 = vadd.f32 0.0, %v370
        %372 = vmatprep.mubr.f32.mxu0 0.0
        %373 = vmatmul.mubr.f32.gmra.mxu0 %v216
        %v374 = vpop.f32.mrf.mxu0
        %v375 = vadd.f32 0.0, %v374
        %v376 = vpop.f32.mrf.mxu0
        %v377 = vadd.f32 0.0, %v376
        %378 = vdwg.mxu0
        %v379 = vmul.f32 %v285, 0.5
        %v380 = vmul.f32 %v287, 0.5
        %v381 = vmul.f32 %v291, 0.5
        %v382 = vmul.f32 %v293, 0.5
        %v383 = vmul.f32 %v297, 0.5
        %v384 = vmul.f32 %v299, 0.5
        %v385 = vmul.f32 %v303, 0.5
        %v386 = vmul.f32 %v305, 0.5
        %v387 = vmul.f32 %v309, 0.5
        %v388 = vmul.f32 %v311, 0.5
        %v389 = vmul.f32 %v315, 0.5
        %v390 = vmul.f32 %v317, 0.5
        %v391 = vmul.f32 %v321, 0.5
        %v392 = vmul.f32 %v323, 0.5
        %v393 = vmul.f32 %v327, 0.5
        %v394 = vmul.f32 %v329, 0.5
        %v395 = vmul.f32 %v333, 0.5
        %v396 = vmul.f32 %v335, 0.5
        %v397 = vmul.f32 %v339, 0.5
        %v398 = vmul.f32 %v341, 0.5
        %v399 = vmul.f32 %v345, 0.5
        %v400 = vmul.f32 %v347, 0.5
        %v401 = vmul.f32 %v351, 0.5
        %v402 = vmul.f32 %v353, 0.5
        %v403 = vmul.f32 %v357, 0.5
        %v404 = vmul.f32 %v359, 0.5
        %v405 = vmul.f32 %v363, 0.5
        %v406 = vmul.f32 %v365, 0.5
        %v407 = vmul.f32 %v369, 0.5
        %v408 = vmul.f32 %v371, 0.5
        %v409 = vmul.f32 %v375, 0.5
        %v410 = vmul.f32 %v377, 0.5
        %v411 = vtanh.pop %v379
        %v412 = vtanh.pop %v380
        %v413 = vtanh.pop %v381
        %v414 = vtanh.pop %v382
        %v415 = vtanh.pop %v383
        %v416 = vtanh.pop %v384
        %v417 = vtanh.pop %v385
        %v418 = vtanh.pop %v386
        %v419 = vtanh.pop %v387
        %v420 = vtanh.pop %v388
        %v421 = vtanh.pop %v389
        %v422 = vtanh.pop %v390
        %v423 = vtanh.pop %v391
        %v424 = vtanh.pop %v392
        %v425 = vtanh.pop %v393
        %v426 = vtanh.pop %v394
        %v427 = vtanh.pop %v395
        %v428 = vtanh.pop %v396
        %v429 = vtanh.pop %v397
        %v430 = vtanh.pop %v398
        %v431 = vtanh.pop %v399
        %v432 = vtanh.pop %v400
        %v433 = vtanh.pop %v401
        %v434 = vtanh.pop %v402
        %v435 = vtanh.pop %v403
        %v436 = vtanh.pop %v404
        %v437 = vtanh.pop %v405
        %v438 = vtanh.pop %v406
        %v439 = vtanh.pop %v407
        %v440 = vtanh.pop %v408
        %v441 = vtanh.pop %v409
        %v442 = vtanh.pop %v410
        %v443 = vadd.f32 %v411, 1.0
        %v444 = vadd.f32 %v412, 1.0
        %v445 = vadd.f32 %v413, 1.0
        %v446 = vadd.f32 %v414, 1.0
        %v447 = vadd.f32 %v415, 1.0
        %v448 = vadd.f32 %v416, 1.0
        %v449 = vadd.f32 %v417, 1.0
        %v450 = vadd.f32 %v418, 1.0
        %v451 = vadd.f32 %v419, 1.0
        %v452 = vadd.f32 %v420, 1.0
        %v453 = vadd.f32 %v421, 1.0
        %v454 = vadd.f32 %v422, 1.0
        %v455 = vadd.f32 %v423, 1.0
        %v456 = vadd.f32 %v424, 1.0
        %v457 = vadd.f32 %v425, 1.0
        %v458 = vadd.f32 %v426, 1.0
        %v459 = vadd.f32 %v427, 1.0
        %v460 = vadd.f32 %v428, 1.0
        %v461 = vadd.f32 %v429, 1.0
        %v462 = vadd.f32 %v430, 1.0
        %v463 = vadd.f32 %v431, 1.0
        %v464 = vadd.f32 %v432, 1.0
        %v465 = vadd.f32 %v433, 1.0
        %v466 = vadd.f32 %v434, 1.0
        %v467 = vadd.f32 %v435, 1.0
        %v468 = vadd.f32 %v436, 1.0
        %v469 = vadd.f32 %v437, 1.0
        %v470 = vadd.f32 %v438, 1.0
        %v471 = vadd.f32 %v439, 1.0
        %v472 = vadd.f32 %v440, 1.0
        %v473 = vadd.f32 %v441, 1.0
        %v474 = vadd.f32 %v442, 1.0
        %v475 = vmul.f32 %v443, 0.5
        %v476 = vmul.f32 %v444, 0.5
        %v477 = vmul.f32 %v445, 0.5
        %v478 = vmul.f32 %v446, 0.5
        %v479 = vmul.f32 %v447, 0.5
        %v480 = vmul.f32 %v448, 0.5
        %v481 = vmul.f32 %v449, 0.5
        %v482 = vmul.f32 %v450, 0.5
        %v483 = vmul.f32 %v451, 0.5
        %v484 = vmul.f32 %v452, 0.5
        %v485 = vmul.f32 %v453, 0.5
        %v486 = vmul.f32 %v454, 0.5
        %v487 = vmul.f32 %v455, 0.5
        %v488 = vmul.f32 %v456, 0.5
        %v489 = vmul.f32 %v457, 0.5
        %v490 = vmul.f32 %v458, 0.5
        %v491 = vmul.f32 %v459, 0.5
        %v492 = vmul.f32 %v460, 0.5
        %v493 = vmul.f32 %v461, 0.5
        %v494 = vmul.f32 %v462, 0.5
        %v495 = vmul.f32 %v463, 0.5
        %v496 = vmul.f32 %v464, 0.5
        %v497 = vmul.f32 %v465, 0.5
        %v498 = vmul.f32 %v466, 0.5
        %v499 = vmul.f32 %v467, 0.5
        %v500 = vmul.f32 %v468, 0.5
        %v501 = vmul.f32 %v469, 0.5
        %v502 = vmul.f32 %v470, 0.5
        %v503 = vmul.f32 %v471, 0.5
        %v504 = vmul.f32 %v472, 0.5
        %v505 = vmul.f32 %v473, 0.5
        %v506 = vmul.f32 %v474, 0.5
        %507 = vst [vmem:[%s137] sm:$0xff] %v475
        %508 = vst [vmem:[%s137 + $0x8] sm:$0xff] %v476
        %509 = vst [vmem:[%s137 + $0x10] sm:$0xff] %v477
        %510 = vst [vmem:[%s137 + $0x18] sm:$0xff] %v478
        %511 = vst [vmem:[%s137 + $0x20] sm:$0xff] %v479
        %512 = vst [vmem:[%s137 + $0x28] sm:$0xff] %v480
        %513 = vst [vmem:[%s137 + $0x30] sm:$0xff] %v481
        %514 = vst [vmem:[%s137 + $0x38] sm:$0xff] %v482
        %515 = vst [vmem:[%s137 + $0x40] sm:$0xff] %v483
        %516 = vst [vmem:[%s137 + $0x48] sm:$0xff] %v484
        %517 = vst [vmem:[%s137 + $0x50] sm:$0xff] %v485
        %518 = vst [vmem:[%s137 + $0x58] sm:$0xff] %v486
        %519 = vst [vmem:[%s137 + $0x60] sm:$0xff] %v487
        %520 = vst [vmem:[%s137 + $0x68] sm:$0xff] %v488
        %521 = vst [vmem:[%s137 + $0x70] sm:$0xff] %v489
        %522 = vst [vmem:[%s137 + $0x78] sm:$0xff] %v490
        %523 = vst [vmem:[%s137 + $0x80] sm:$0xff] %v491
        %524 = vst [vmem:[%s137 + $0x88] sm:$0xff] %v492
        %525 = vst [vmem:[%s137 + $0x90] sm:$0xff] %v493
        %526 = vst [vmem:[%s137 + $0x98] sm:$0xff] %v494
        %527 = vst [vmem:[%s137 + $0xa0] sm:$0xff] %v495
        %528 = vst [vmem:[%s137 + $0xa8] sm:$0xff] %v496
        %529 = vst [vmem:[%s137 + $0xb0] sm:$0xff] %v497
        %530 = vst [vmem:[%s137 + $0xb8] sm:$0xff] %v498
        %531 = vst [vmem:[%s137 + $0xc0] sm:$0xff] %v499
        %532 = vst [vmem:[%s137 + $0xc8] sm:$0xff] %v500
        %533 = vst [vmem:[%s137 + $0xd0] sm:$0xff] %v501
        %534 = vst [vmem:[%s137 + $0xd8] sm:$0xff] %v502
        %535 = vst [vmem:[%s137 + $0xe0] sm:$0xff] %v503
        %536 = vst [vmem:[%s137 + $0xe8] sm:$0xff] %v504
        %537 = vst [vmem:[%s137 + $0xf0] sm:$0xff] %v505
        %538 = vst [vmem:[%s137 + $0xf8] sm:$0xff] %v506
        %s539 = sand.u32 %s71, 1
        %s540 = scalar_lea.sflag [#allocation3], %s539
        %s541 = sand.u32 %s71, 1
        %s542 = smul.addr %s541, 256
        %s543 = scalar_lea.vmem [#allocation2], %s542
        // Predicated region
        $region29: #{tpu_custom_call.1} parent=27 // pred_check
          %p544 = pneg %p81
        $region30: #{tpu_custom_call.1} parent=27 // pred_check_branch
          %546 = sbr.rel (%p544) target = $region32
        $region31: #{tpu_custom_call.1} parent=27 // pred_region
          %s547 = smul.u32 16, %s16
          %s549 = ssub.s32 4096, 4096
          %550 = vsyncadd %s540, %s549
          %s551 = smul.addr %s547, 2
          %s552 = smul.addr %s551, 128
          %s553 = scalar_lea.hbm %s2, %s552
          %s554 = sshll.u32 %s543, 4
          %s555 = int_to_ptr.vmem [resolvable:$true] %s554
          %560 = dma.vmem_to_hbm [thread:$0]  %s555, 4096, %s553, %s540, 256, 256, 16
        $region32: #{tpu_custom_call.1} parent=27 // pred_fallthru
          _
      $region28: #{tpu_custom_call.1} parent=5 // pred_fallthru
        _
      %p561 = scmp.le.s32.totalorder 2, %s11
      // Predicated region
      $region33: #{tpu_custom_call.1} parent=5 // pred_check
        %p562 = pneg %p561
      $region34: #{tpu_custom_call.1} parent=5 // pred_check_branch
        %564 = sbr.rel (%p562) target = $region36
      $region35: #{tpu_custom_call.1} parent=5 // pred_region
        %s565 = ssub.s32 %s11, 2
        // Predicated region
        $region37: #{tpu_custom_call.1} parent=35 // pred_check
          %p566 = pneg %p87
        $region38: #{tpu_custom_call.1} parent=35 // pred_check_branch
          %568 = sbr.rel (%p566) target = $region40
        $region39: #{tpu_custom_call.1} parent=35 // pred_region
          %s569 = sand.u32 %s72, 1
          %s570 = scalar_lea.sflag [#allocation3], %s569
          %s571 = sand.u32 %s72, 1
          %s572 = smul.addr %s571, 256
          %s573 = scalar_lea.vmem [#allocation2], %s572
          %574 = dma.done %s570, 4096
        $region40: #{tpu_custom_call.1} parent=35 // pred_fallthru
          _
      $region36: #{tpu_custom_call.1} parent=5 // pred_fallthru
        _
    $region6: #{tpu_custom_call.1} parent=1 // loop_footer
      %s15 = sadd.s32 1, %s11
    $region7: #{tpu_custom_call.1} parent=1 // loop_footer_branch
      %10 = sbr.rel target = $region3
    $region8: #{tpu_custom_call.1} parent=1 // loop_exit
      _
    %575 = vsyncpa [#allocation3], 1
    %s576 = scalar_lea.sflag [#allocation3], 1
    %577 = vsyncpa %s576, 1

</llo_original>
